<compile_context>
chip_gen: v6e
topology: v6e:2x2x1
jax: 0.10.0
libtpu: 0.0.40
codegen_flags: <defaults>
</compile_context>

<pallas_src>
import math

import jax
import jax.numpy as jnp
from jax.experimental import pallas as pl
from jax.experimental.pallas import tpu as pltpu

BOTTLENECK = 256
COMPRESSED = 32
SNR_DB = 10


def _round_up(x, m):
    return ((x + m - 1) // m) * m


# ----------------------------------------------------------------------------
# Pallas kernel: fused 3-layer MLP (Linear+ReLU, Linear+ReLU, Linear)
# ----------------------------------------------------------------------------
def _channel_encoder_kernel(f_ref, w1_ref, b1_ref, w2_ref, b2_ref, w3_ref, b3_ref, o_ref):
    # f: (TB, 256) float; w*: bf16 (in, out); b*: f32 (1, out); o: (TB, 32) f32.
    x = f_ref[...].astype(jnp.bfloat16)
    h = jnp.dot(x, w1_ref[...], preferred_element_type=jnp.float32) + b1_ref[...]
    h = jnp.maximum(h, 0.0)
    h = jnp.dot(h.astype(jnp.bfloat16), w2_ref[...],
                preferred_element_type=jnp.float32) + b2_ref[...]
    h = jnp.maximum(h, 0.0)
    o = jnp.dot(h.astype(jnp.bfloat16), w3_ref[...],
                preferred_element_type=jnp.float32) + b3_ref[...]
    o_ref[...] = o.astype(o_ref.dtype)


# ----------------------------------------------------------------------------
# Wrapper
# ----------------------------------------------------------------------------
def channel_encoder_forward(params, f, snr_db=SNR_DB, *, block_b=2048):
    """f: (B, 256) -> (B, 32). `snr_db` is unused in the PyTorch forward."""
    del snr_db
    B, D = f.shape
    w1, b1 = params["w1"], params["b1"]
    w2, b2 = params["w2"], params["b2"]
    w3, b3 = params["w3"], params["b3"]
    F1, F2, F3 = w1.shape[1], w2.shape[1], w3.shape[1]

    # Batch tile selection:
    #   * tiny B: one block equal to the full batch (always a legal block shape)
    #   * otherwise: at least 2 blocks (keeps both v7x TensorCores busy), tile a
    #     multiple of 8 sublanes, capped at block_b (multiple of 256).
    if B <= 8:
        tb = B
    else:
        tb = min(block_b, _round_up(pl.cdiv(B, 2), 8))
    n_blocks = pl.cdiv(B, tb)  # ragged trailing block handled by Pallas masking

    return pl.pallas_call(
        _channel_encoder_kernel,
        out_shape=jax.ShapeDtypeStruct((B, F3), jnp.float32),
        grid=(n_blocks,),
        in_specs=[
            pl.BlockSpec((tb, D), lambda i: (i, 0)),     # activations: tiled over batch
            pl.BlockSpec((D, F1), lambda i: (0, 0)),     # weights / biases: resident
            pl.BlockSpec((1, F1), lambda i: (0, 0)),
            pl.BlockSpec((F1, F2), lambda i: (0, 0)),
            pl.BlockSpec((1, F2), lambda i: (0, 0)),
            pl.BlockSpec((F2, F3), lambda i: (0, 0)),
            pl.BlockSpec((1, F3), lambda i: (0, 0)),
        ],
        out_specs=pl.BlockSpec((tb, F3), lambda i: (i, 0)),
        compiler_params=pltpu.CompilerParams(
            dimension_semantics=("parallel",),
            vmem_limit_bytes=32 * 1024 * 1024,
        ),
    )(f, w1, b1, w2, b2, w3, b3)


# ----------------------------------------------------------------------------
# Pure-JAX references (for correctness check)
# ----------------------------------------------------------------------------
def channel_encoder_ref_f32(params_f32, f):
    h = jnp.maximum(f @ params_f32["w1"] + params_f32["b1"], 0.0)
    h = jnp.maximum(h @ params_f32["w2"] + params_f32["b2"], 0.0)
    return h @ params_f32["w3"] + params_f32["b3"]


def channel_encoder_ref_mixed(params, f):
    """Same bf16-matmul / f32-accumulate precision pattern as the kernel."""
    def lin(x, w, b):
        return jnp.dot(x.astype(jnp.bfloat16), w, preferred_element_type=jnp.float32) + b
    h = jnp.maximum(lin(f, params["w1"], params["b1"]), 0.0)
    h = jnp.maximum(lin(h, params["w2"], params["b2"]), 0.0)
    return lin(h, params["w3"], params["b3"])


# ----------------------------------------------------------------------------
# Parameter init / prep (PyTorch nn.Linear-style uniform).
# Weights are stored pre-transposed as (in, out) in bf16; biases as (1, F) f32.
# ----------------------------------------------------------------------------
def init_params_f32(key):
    ks = jax.random.split(key, 6)

    def u(k, shape, fan_in):
        bound = 1.0 / math.sqrt(fan_in)
        return jax.random.uniform(k, shape, jnp.float32, -bound, bound)

    return {
        "w1": u(ks[0], (BOTTLENECK, 128), BOTTLENECK),
        "b1": u(ks[1], (128,), BOTTLENECK),
        "w2": u(ks[2], (128, 64), 128),
        "b2": u(ks[3], (64,), 128),
        "w3": u(ks[4], (64, COMPRESSED), 64),
        "b3": u(ks[5], (COMPRESSED,), 64),
    }


def prep_params(params_f32):
    return {
        "w1": params_f32["w1"].astype(jnp.bfloat16),
        "b1": params_f32["b1"].reshape(1, -1).astype(jnp.float32),
        "w2": params_f32["w2"].astype(jnp.bfloat16),
        "b2": params_f32["b2"].reshape(1, -1).astype(jnp.float32),
        "w3": params_f32["w3"].astype(jnp.bfloat16),
        "b3": params_f32["b3"].reshape(1, -1).astype(jnp.float32),
    }


# ----------------------------------------------------------------------------
# Main
# ----------------------------------------------------------------------------
if __name__ == "__main__":
    key = jax.random.PRNGKey(0)
    kf, kp, kf2 = jax.random.split(key, 3)

    params_f32 = init_params_f32(kp)
    params = prep_params(params_f32)

    fwd = jax.jit(channel_encoder_forward)

    # Small-shape check (matches module usage): batch=2.
    B = 2
    f = jax.random.normal(kf, (B, BOTTLENECK), jnp.float32)
    out = jax.block_until_ready(fwd(params, f))
    assert out.shape == (B, COMPRESSED), out.shape
    assert bool(jnp.all(jnp.isfinite(out)))

    ref_mixed = channel_encoder_ref_mixed(params, f)
    ref_f32 = channel_encoder_ref_f32(params_f32, f)
    assert bool(jnp.allclose(out, ref_mixed, atol=1e-3, rtol=1e-3)), float(
        jnp.max(jnp.abs(out - ref_mixed)))
    assert bool(jnp.allclose(out, ref_f32, atol=5e-2, rtol=5e-2)), float(
        jnp.max(jnp.abs(out - ref_f32)))

    # Ragged multi-block path (exercises >=2 blocks + masked trailing block).
    B2 = 20
    f2 = jax.random.normal(kf2, (B2, BOTTLENECK), jnp.float32)
    out2 = jax.block_until_ready(fwd(params, f2))
    assert out2.shape == (B2, COMPRESSED), out2.shape
    ref2 = channel_encoder_ref_mixed(params, f2)
    assert bool(jnp.allclose(out2, ref2, atol=1e-3, rtol=1e-3)), float(
        jnp.max(jnp.abs(out2 - ref2)))

    print("KERNEL_OK")
</pallas_src>

<mosaic_0001>
module attributes {stable_mosaic.version = 11 : i64} {
  func.func @_channel_encoder_kernel(%arg0: i32, %arg1: memref<2x256xf32, #tpu.memory_space<vmem>>, %arg2: memref<256x128xbf16, #tpu.memory_space<vmem>>, %arg3: memref<1x128xf32, #tpu.memory_space<vmem>>, %arg4: memref<128x64xbf16, #tpu.memory_space<vmem>>, %arg5: memref<1x64xf32, #tpu.memory_space<vmem>>, %arg6: memref<64x32xbf16, #tpu.memory_space<vmem>>, %arg7: memref<1x32xf32, #tpu.memory_space<vmem>>, %arg8: memref<2x32xf32, #tpu.memory_space<vmem>>) attributes {dimension_semantics = [#tpu.dimension_semantics<parallel>], iteration_bounds = array<i64: 1>, scalar_prefetch = 0 : i64, scratch_operands = 0 : i64, tpu.core_type = #tpu.core_type<tc>, window_params = [{transform_indices = @transform_0, window_bounds = array<i64: 2, 256>}, {pipeline_mode = #tpu.pipeline_mode<synchronous>, transform_indices = @transform_1, window_bounds = array<i64: 256, 128>}, {pipeline_mode = #tpu.pipeline_mode<synchronous>, transform_indices = @transform_2, window_bounds = array<i64: 1, 128>}, {pipeline_mode = #tpu.pipeline_mode<synchronous>, transform_indices = @transform_3, window_bounds = array<i64: 128, 64>}, {pipeline_mode = #tpu.pipeline_mode<synchronous>, transform_indices = @transform_4, window_bounds = array<i64: 1, 64>}, {pipeline_mode = #tpu.pipeline_mode<synchronous>, transform_indices = @transform_5, window_bounds = array<i64: 64, 32>}, {pipeline_mode = #tpu.pipeline_mode<synchronous>, transform_indices = @transform_6, window_bounds = array<i64: 1, 32>}, {transform_indices = @transform_7, window_bounds = array<i64: 2, 32>}]} {
    %c0 = arith.constant 0 : index
    %c0_0 = arith.constant 0 : index
    %0 = vector.load %arg1[%c0, %c0_0] : memref<2x256xf32, #tpu.memory_space<vmem>>, vector<2x256xf32>
    %1 = arith.truncf %0 : vector<2x256xf32> to vector<2x256xbf16>
    %c0_1 = arith.constant 0 : index
    %c0_2 = arith.constant 0 : index
    %2 = vector.load %arg2[%c0_1, %c0_2] : memref<256x128xbf16, #tpu.memory_space<vmem>>, vector<256x128xbf16>
    %cst = arith.constant dense<0.000000e+00> : vector<2x128xf32>
    %3 = tpu.matmul %1, %2, %cst {dimension_numbers = #tpu.dot_dimension_numbers<[1], [0], [0], [1], [0, 0, 1, 1], [], []>} : vector<2x256xbf16>, vector<256x128xbf16>, vector<2x128xf32> -> vector<2x128xf32>
    %c0_3 = arith.constant 0 : index
    %c0_4 = arith.constant 0 : index
    %4 = vector.load %arg3[%c0_3, %c0_4] : memref<1x128xf32, #tpu.memory_space<vmem>>, vector<1x128xf32>
    %5 = vector.broadcast %4 : vector<1x128xf32> to vector<2x128xf32>
    %6 = arith.addf %3, %5 : vector<2x128xf32>
    %cst_5 = arith.constant 0.000000e+00 : f32
    %7 = vector.broadcast %cst_5 : f32 to vector<2x128xf32>
    %8 = arith.maximumf %6, %7 : vector<2x128xf32>
    %9 = arith.truncf %8 : vector<2x128xf32> to vector<2x128xbf16>
    %c0_6 = arith.constant 0 : index
    %c0_7 = arith.constant 0 : index
    %10 = vector.load %arg4[%c0_6, %c0_7] : memref<128x64xbf16, #tpu.memory_space<vmem>>, vector<128x64xbf16>
    %cst_8 = arith.constant dense<0.000000e+00> : vector<2x64xf32>
    %11 = tpu.matmul %9, %10, %cst_8 {dimension_numbers = #tpu.dot_dimension_numbers<[1], [0], [0], [1], [0, 0, 1, 1], [], []>} : vector<2x128xbf16>, vector<128x64xbf16>, vector<2x64xf32> -> vector<2x64xf32>
    %c0_9 = arith.constant 0 : index
    %c0_10 = arith.constant 0 : index
    %12 = vector.load %arg5[%c0_9, %c0_10] : memref<1x64xf32, #tpu.memory_space<vmem>>, vector<1x64xf32>
    %13 = vector.broadcast %12 : vector<1x64xf32> to vector<2x64xf32>
    %14 = arith.addf %11, %13 : vector<2x64xf32>
    %cst_11 = arith.constant 0.000000e+00 : f32
    %15 = vector.broadcast %cst_11 : f32 to vector<2x64xf32>
    %16 = arith.maximumf %14, %15 : vector<2x64xf32>
    %17 = arith.truncf %16 : vector<2x64xf32> to vector<2x64xbf16>
    %c0_12 = arith.constant 0 : index
    %c0_13 = arith.constant 0 : index
    %18 = vector.load %arg6[%c0_12, %c0_13] : memref<64x32xbf16, #tpu.memory_space<vmem>>, vector<64x32xbf16>
    %cst_14 = arith.constant dense<0.000000e+00> : vector<2x32xf32>
    %19 = tpu.matmul %17, %18, %cst_14 {dimension_numbers = #tpu.dot_dimension_numbers<[1], [0], [0], [1], [0, 0, 1, 1], [], []>} : vector<2x64xbf16>, vector<64x32xbf16>, vector<2x32xf32> -> vector<2x32xf32>
    %c0_15 = arith.constant 0 : index
    %c0_16 = arith.constant 0 : index
    %20 = vector.load %arg7[%c0_15, %c0_16] : memref<1x32xf32, #tpu.memory_space<vmem>>, vector<1x32xf32>
    %21 = vector.broadcast %20 : vector<1x32xf32> to vector<2x32xf32>
    %22 = arith.addf %19, %21 : vector<2x32xf32>
    %c0_17 = arith.constant 0 : index
    %c0_18 = arith.constant 0 : index
    %23 = vector.load %arg8[%c0_17, %c0_18] : memref<2x32xf32, #tpu.memory_space<vmem>>, vector<2x32xf32>
    tpu.vector_store %arg8[%c0_17, %c0_18], %22 {strides = array<i32>} : memref<2x32xf32, #tpu.memory_space<vmem>>, vector<2x32xf32>,
    return
  }
  func.func @transform_0(%arg0: i32) -> (i32, i32) {
    %c0_i32 = arith.constant 0 : i32
    %c0_i32_0 = arith.constant 0 : i32
    return %arg0, %c0_i32 : i32, i32
  }
  func.func @transform_1(%arg0: i32) -> (i32, i32) {
    %c0_i32 = arith.constant 0 : i32
    %c0_i32_0 = arith.constant 0 : i32
    %c0_i32_1 = arith.constant 0 : i32
    return %c0_i32, %c0_i32_0 : i32, i32
  }
  func.func @transform_2(%arg0: i32) -> (i32, i32) {
    %c0_i32 = arith.constant 0 : i32
    %c0_i32_0 = arith.constant 0 : i32
    %c0_i32_1 = arith.constant 0 : i32
    return %c0_i32, %c0_i32_0 : i32, i32
  }
  func.func @transform_3(%arg0: i32) -> (i32, i32) {
    %c0_i32 = arith.constant 0 : i32
    %c0_i32_0 = arith.constant 0 : i32
    %c0_i32_1 = arith.constant 0 : i32
    return %c0_i32, %c0_i32_0 : i32, i32
  }
  func.func @transform_4(%arg0: i32) -> (i32, i32) {
    %c0_i32 = arith.constant 0 : i32
    %c0_i32_0 = arith.constant 0 : i32
    %c0_i32_1 = arith.constant 0 : i32
    return %c0_i32, %c0_i32_0 : i32, i32
  }
  func.func @transform_5(%arg0: i32) -> (i32, i32) {
    %c0_i32 = arith.constant 0 : i32
    %c0_i32_0 = arith.constant 0 : i32
    %c0_i32_1 = arith.constant 0 : i32
    return %c0_i32, %c0_i32_0 : i32, i32
  }
  func.func @transform_6(%arg0: i32) -> (i32, i32) {
    %c0_i32 = arith.constant 0 : i32
    %c0_i32_0 = arith.constant 0 : i32
    %c0_i32_1 = arith.constant 0 : i32
    return %c0_i32, %c0_i32_0 : i32, i32
  }
  func.func @transform_7(%arg0: i32) -> (i32, i32) {
    %c0_i32 = arith.constant 0 : i32
    %c0_i32_0 = arith.constant 0 : i32
    return %arg0, %c0_i32 : i32, i32
  }
}

</mosaic_0001>

<llo_original>
// kernel: channel_encoder_forward.1
$region0: #{channel_encoder_forward.1}
  #allocation0 [shape = 'u32[]', space=smem, size = 0x4, offset = 0x4, fixed_abs, tag = 'smem constant byte address 0x4 - core index']
  #allocation1 [shape = 'u32[144,128]{1,0:T(1,128)}', space=vmem, size = 0x12000, scoped, tag = 'internal scratch']
  %s0 = inlined_call_operand.vmem [shape: f32[2,256], index: 0, kind: input, shape index: {}]
  %s1 = inlined_call_operand.vmem [shape: bf16[256,128], index: 1, kind: input, shape index: {}]
  %s2 = inlined_call_operand.vmem [shape: f32[1,128], index: 2, kind: input, shape index: {}]
  %s3 = inlined_call_operand.vmem [shape: bf16[128,64], index: 3, kind: input, shape index: {}]
  %s4 = inlined_call_operand.vmem [shape: f32[1,64], index: 4, kind: input, shape index: {}]
  %s5 = inlined_call_operand.vmem [shape: bf16[64,32], index: 5, kind: input, shape index: {}]
  %s6 = inlined_call_operand.vmem [shape: f32[1,32], index: 6, kind: input, shape index: {}]
  %s7 = inlined_call_operand.hbm [shape: f32[2,32], index: 7, kind: output, shape index: {}]
  %s8 = sld [smem:[#allocation0]]
  $region38: #{channel_encoder_forward.1} parent=0
    _
  %s10 = ssub.s32 1, %s8
  %s11 = scalar_select 0, %s10, %s8
  $region1: #{channel_encoder_forward.1} parent=0
    #allocation2 [shape = 'u8[1024]{0}', space=vmem, size = 0x400, scoped, tag = 'output window, operand 0, single buffered']
    #allocation3 [shape = 's32[1]{0}', space=sflag, size = 0x4, scoped, tag = 'scoped memory for channel_encoder_forward.1']
    %12 = vsyncpa [#allocation3], 0
    // Predicated region
    $region2: #{channel_encoder_forward.1} parent=1 // pred_check
      _
    $region3: #{channel_encoder_forward.1} parent=1 // pred_check_branch
      %14 = sbr.rel (0) target = $region5
    $region4: #{channel_encoder_forward.1} parent=1 // pred_region
      _
    $region5: #{channel_encoder_forward.1} parent=1 // pred_fallthru
      _
    // Predicated region
    $region6: #{channel_encoder_forward.1} parent=1 // pred_check
      _
    $region7: #{channel_encoder_forward.1} parent=1 // pred_check_branch
      %16 = sbr.rel (0) target = $region9
    $region8: #{channel_encoder_forward.1} parent=1 // pred_region
      _
    $region9: #{channel_encoder_forward.1} parent=1 // pred_fallthru
      _
    // Predicated region
    $region10: #{channel_encoder_forward.1} parent=1 // pred_check
      _
    $region11: #{channel_encoder_forward.1} parent=1 // pred_check_branch
      %18 = sbr.rel (0) target = $region13
    $region12: #{channel_encoder_forward.1} parent=1 // pred_region
      _
    $region13: #{channel_encoder_forward.1} parent=1 // pred_fallthru
      _
    // Predicated region
    $region14: #{channel_encoder_forward.1} parent=1 // pred_check
      _
    $region15: #{channel_encoder_forward.1} parent=1 // pred_check_branch
      %20 = sbr.rel (0) target = $region17
    $region16: #{channel_encoder_forward.1} parent=1 // pred_region
      _
    $region17: #{channel_encoder_forward.1} parent=1 // pred_fallthru
      _
    // Predicated region
    $region18: #{channel_encoder_forward.1} parent=1 // pred_check
      _
    $region19: #{channel_encoder_forward.1} parent=1 // pred_check_branch
      %22 = sbr.rel (0) target = $region21
    $region20: #{channel_encoder_forward.1} parent=1 // pred_region
      _
    $region21: #{channel_encoder_forward.1} parent=1 // pred_fallthru
      _
    // Predicated region
    $region22: #{channel_encoder_forward.1} parent=1 // pred_check
      _
    $region23: #{channel_encoder_forward.1} parent=1 // pred_check_branch
      %24 = sbr.rel (0) target = $region25
    $region24: #{channel_encoder_forward.1} parent=1 // pred_region
      _
    $region25: #{channel_encoder_forward.1} parent=1 // pred_fallthru
      _
    // Predicated region
    $region26: #{channel_encoder_forward.1} parent=1 // pred_check
      _
    $region27: #{channel_encoder_forward.1} parent=1 // pred_check_branch
      %26 = sbr.rel (0) target = $region29
    $region28: #{channel_encoder_forward.1} parent=1 // pred_region
      _
    $region29: #{channel_encoder_forward.1} parent=1 // pred_fallthru
      _
    %v28 = vld [vmem:[%s0] sm:$0xf]
    %v31 = vunpack.c.l.s4 1983009808
    %v32 = vunpack.c.0.s8 %v31
    %v33 = vlaneseq
    %v34 = vshrl.u32 %v33, 7
    %v35 = vsub.s32 %v32, %v34
    %v36 = vrot.slane %v28, %v35
    %v37 = vcombine.high %v36, %v36
    %v40 = vpack.c.bf16 %v36, %v36
    %v41 = vpack.c.bf16 %v37, %v37
    %v42 = vld [vmem:[%s1] sm:$0xf]
    %v43 = vld [vmem:[%s1 + $0x4] sm:$0xf]
    %v44 = vld [vmem:[%s1 + $0x8] sm:$0xf]
    %v45 = vld [vmem:[%s1 + $0xc] sm:$0xf]
    %v46 = vld [vmem:[%s1 + $0x10] sm:$0xf]
    %v47 = vld [vmem:[%s1 + $0x14] sm:$0xf]
    %v48 = vld [vmem:[%s1 + $0x18] sm:$0xf]
    %v49 = vld [vmem:[%s1 + $0x1c] sm:$0xf]
    %v50 = vld [vmem:[%s1 + $0x20] sm:$0xf]
    %v51 = vld [vmem:[%s1 + $0x24] sm:$0xf]
    %v52 = vld [vmem:[%s1 + $0x28] sm:$0xf]
    %v53 = vld [vmem:[%s1 + $0x2c] sm:$0xf]
    %v54 = vld [vmem:[%s1 + $0x30] sm:$0xf]
    %v55 = vld [vmem:[%s1 + $0x34] sm:$0xf]
    %v56 = vld [vmem:[%s1 + $0x38] sm:$0xf]
    %v57 = vld [vmem:[%s1 + $0x3c] sm:$0xf]
    %v58 = vld [vmem:[%s1 + $0x40] sm:$0xf]
    %v59 = vld [vmem:[%s1 + $0x44] sm:$0xf]
    %v60 = vld [vmem:[%s1 + $0x48] sm:$0xf]
    %v61 = vld [vmem:[%s1 + $0x4c] sm:$0xf]
    %v62 = vld [vmem:[%s1 + $0x50] sm:$0xf]
    %v63 = vld [vmem:[%s1 + $0x54] sm:$0xf]
    %v64 = vld [vmem:[%s1 + $0x58] sm:$0xf]
    %v65 = vld [vmem:[%s1 + $0x5c] sm:$0xf]
    %v66 = vld [vmem:[%s1 + $0x60] sm:$0xf]
    %v67 = vld [vmem:[%s1 + $0x64] sm:$0xf]
    %v68 = vld [vmem:[%s1 + $0x68] sm:$0xf]
    %v69 = vld [vmem:[%s1 + $0x6c] sm:$0xf]
    %v70 = vld [vmem:[%s1 + $0x70] sm:$0xf]
    %v71 = vld [vmem:[%s1 + $0x74] sm:$0xf]
    %v72 = vld [vmem:[%s1 + $0x78] sm:$0xf]
    %v73 = vld [vmem:[%s1 + $0x7c] sm:$0xf]
    %v74 = vld [vmem:[%s2] sm:$0x1]
    %v76 = vlaneseq
    %v77 = vshrl.u32 %v76, 7
    %v78 = vsub.s32 0, %v77
    %v79 = vrot.slane %v74, %v78
    %v113 = vunpack.c.l.b16 %v42
    %v114 = vunpack.c.l.b16 %v43
    %v115 = vunpack.c.l.b16 %v44
    %v116 = vunpack.c.l.b16 %v45
    %v117 = vunpack.c.l.b16 %v46
    %v118 = vunpack.c.l.b16 %v47
    %v119 = vunpack.c.l.b16 %v48
    %v120 = vunpack.c.l.b16 %v49
    %v121 = vunpack.c.l.b16 %v50
    %v122 = vunpack.c.l.b16 %v51
    %v123 = vunpack.c.l.b16 %v52
    %v124 = vunpack.c.l.b16 %v53
    %v125 = vunpack.c.l.b16 %v54
    %v126 = vunpack.c.l.b16 %v55
    %v127 = vunpack.c.l.b16 %v56
    %v128 = vunpack.c.l.b16 %v57
    %v129 = vunpack.c.l.b16 %v58
    %v130 = vunpack.c.l.b16 %v59
    %v131 = vunpack.c.l.b16 %v60
    %v132 = vunpack.c.l.b16 %v61
    %v133 = vunpack.c.l.b16 %v62
    %v134 = vunpack.c.l.b16 %v63
    %v135 = vunpack.c.l.b16 %v64
    %v136 = vunpack.c.l.b16 %v65
    %v137 = vunpack.c.l.b16 %v66
    %v138 = vunpack.c.l.b16 %v67
    %v139 = vunpack.c.l.b16 %v68
    %v140 = vunpack.c.l.b16 %v69
    %v141 = vunpack.c.l.b16 %v70
    %v142 = vunpack.c.l.b16 %v71
    %v143 = vunpack.c.l.b16 %v72
    %v144 = vunpack.c.l.b16 %v73
    %v145 = vpack.c.b16 %v114, %v113
    %v146 = vpack.c.b16 %v116, %v115
    %v147 = vpack.c.b16 %v118, %v117
    %v148 = vpack.c.b16 %v120, %v119
    %v149 = vpack.c.b16 %v122, %v121
    %v150 = vpack.c.b16 %v124, %v123
    %v151 = vpack.c.b16 %v126, %v125
    %v152 = vpack.c.b16 %v128, %v127
    %v153 = vpack.c.b16 %v130, %v129
    %v154 = vpack.c.b16 %v132, %v131
    %v155 = vpack.c.b16 %v134, %v133
    %v156 = vpack.c.b16 %v136, %v135
    %v157 = vpack.c.b16 %v138, %v137
    %v158 = vpack.c.b16 %v140, %v139
    %v159 = vpack.c.b16 %v142, %v141
    %v160 = vpack.c.b16 %v144, %v143
    %177 = vmatprep.subr.bf16.mxu0 0
    %178 = vmatpush1.bf16.msra.mxu0 %v152
    %179 = vmatprep.subr.bf16.mxu0 0
    %180 = vmatpush1.bf16.msra.mxu0 %v151
    %181 = vmatprep.subr.bf16.mxu0 0
    %182 = vmatpush1.bf16.msra.mxu0 %v150
    %183 = vmatprep.subr.bf16.mxu0 0
    %184 = vmatpush1.bf16.msra.mxu0 %v149
    %185 = vmatprep.subr.bf16.mxu0 0
    %186 = vmatpush1.bf16.msra.mxu0 %v148
    %187 = vmatprep.subr.bf16.mxu0 0
    %188 = vmatpush1.bf16.msra.mxu0 %v147
    %189 = vmatprep.subr.bf16.mxu0 0
    %190 = vmatpush1.bf16.msra.mxu0 %v146
    %191 = vmatprep.subr.bf16.mxu0 0
    %192 = vmatpush1.bf16.msra.mxu0 %v145
    %193 = vmatprep.subr.bf16.mxu0 0
    %194 = vmatpush2.bf16.msra.mxu0 %v160
    %195 = vmatprep.subr.bf16.mxu0 0
    %196 = vmatpush2.bf16.msra.mxu0 %v159
    %197 = vmatprep.subr.bf16.mxu0 0
    %198 = vmatpush2.bf16.msra.mxu0 %v158
    %199 = vmatprep.subr.bf16.mxu0 0
    %200 = vmatpush2.bf16.msra.mxu0 %v157
    %201 = vmatprep.subr.bf16.mxu0 0
    %202 = vmatpush2.bf16.msra.mxu0 %v156
    %203 = vmatprep.subr.bf16.mxu0 0
    %204 = vmatpush2.bf16.msra.mxu0 %v155
    %205 = vmatprep.subr.bf16.mxu0 0
    %206 = vmatpush2.bf16.msra.mxu0 %v154
    %207 = vmatprep.subr.bf16.mxu0 0
    %208 = vmatpush2.bf16.msra.mxu0 %v153
    %209 = vmatprep.mubr.bf16.mxu0 %v41
    %210 = vmatmul.mubr.bf16.gmra.mxu0 %v40
    %v211 = vpop.f32.mrf.mxu0
    %v212 = vadd.f32 %v79, %v211
    %v213 = vpop.f32.mrf.mxu0
    %v214 = vpop.f32.mrf.mxu0
    %v215 = vpop.f32.mrf.mxu0
    %216 = vdwg.mxu0
    %v217 = vmax.f32 %v212, 0.0
    %v218 = vpack.c.bf16 %v217, %v217
    %v219 = vld [vmem:[%s3] sm:$0xf]
    %v220 = vld [vmem:[%s3 + $0x4] sm:$0xf]
    %v221 = vld [vmem:[%s3 + $0x8] sm:$0xf]
    %v222 = vld [vmem:[%s3 + $0xc] sm:$0xf]
    %v223 = vld [vmem:[%s3 + $0x10] sm:$0xf]
    %v224 = vld [vmem:[%s3 + $0x14] sm:$0xf]
    %v225 = vld [vmem:[%s3 + $0x18] sm:$0xf]
    %v226 = vld [vmem:[%s3 + $0x1c] sm:$0xf]
    %v227 = vld [vmem:[%s3 + $0x20] sm:$0xf]
    %v228 = vld [vmem:[%s3 + $0x24] sm:$0xf]
    %v229 = vld [vmem:[%s3 + $0x28] sm:$0xf]
    %v230 = vld [vmem:[%s3 + $0x2c] sm:$0xf]
    %v231 = vld [vmem:[%s3 + $0x30] sm:$0xf]
    %v232 = vld [vmem:[%s3 + $0x34] sm:$0xf]
    %v233 = vld [vmem:[%s3 + $0x38] sm:$0xf]
    %v234 = vld [vmem:[%s3 + $0x3c] sm:$0xf]
    %v235 = vld [vmem:[%s4] sm:$0x1]
    %v237 = vlaneseq
    %v238 = vshrl.u32 %v237, 7
    %v239 = vsub.s32 0, %v238
    %v240 = vrot.slane %v235, %v239
    %v258 = vunpack.c.l.b16 %v219
    %v259 = vunpack.c.l.b16 %v220
    %v260 = vunpack.c.l.b16 %v221
    %v261 = vunpack.c.l.b16 %v222
    %v262 = vunpack.c.l.b16 %v223
    %v263 = vunpack.c.l.b16 %v224
    %v264 = vunpack.c.l.b16 %v225
    %v265 = vunpack.c.l.b16 %v226
    %v266 = vunpack.c.l.b16 %v227
    %v267 = vunpack.c.l.b16 %v228
    %v268 = vunpack.c.l.b16 %v229
    %v269 = vunpack.c.l.b16 %v230
    %v270 = vunpack.c.l.b16 %v231
    %v271 = vunpack.c.l.b16 %v232
    %v272 = vunpack.c.l.b16 %v233
    %v273 = vunpack.c.l.b16 %v234
    %v274 = vpack.c.b16 %v259, %v258
    %v275 = vpack.c.b16 %v261, %v260
    %v276 = vpack.c.b16 %v263, %v262
    %v277 = vpack.c.b16 %v265, %v264
    %v278 = vpack.c.b16 %v267, %v266
    %v279 = vpack.c.b16 %v269, %v268
    %v280 = vpack.c.b16 %v271, %v270
    %v281 = vpack.c.b16 %v273, %v272
    %290 = vmatprep.subr.bf16.mxu0 0
    %291 = vmatpush1.bf16.msra.mxu0 %v281
    %292 = vmatprep.subr.bf16.mxu0 0
    %293 = vmatpush1.bf16.msra.mxu0 %v280
    %294 = vmatprep.subr.bf16.mxu0 0
    %295 = vmatpush1.bf16.msra.mxu0 %v279
    %296 = vmatprep.subr.bf16.mxu0 0
    %297 = vmatpush1.bf16.msra.mxu0 %v278
    %298 = vmatprep.subr.bf16.mxu0 0
    %299 = vmatpush1.bf16.msra.mxu0 %v277
    %300 = vmatprep.subr.bf16.mxu0 0
    %301 = vmatpush1.bf16.msra.mxu0 %v276
    %302 = vmatprep.subr.bf16.mxu0 0
    %303 = vmatpush1.bf16.msra.mxu0 %v275
    %304 = vmatprep.subr.bf16.mxu0 0
    %305 = vmatpush1.bf16.msra.mxu0 %v274
    %306 = vmatprep.subr.bf16.mxu0 0
    %307 = vmatpush2.bf16.msra.mxu0 0
    %308 = vmatprep.subr.bf16.mxu0 0
    %309 = vmatpush2.bf16.msra.mxu0 0
    %310 = vmatprep.subr.bf16.mxu0 0
    %311 = vmatpush2.bf16.msra.mxu0 0
    %312 = vmatprep.subr.bf16.mxu0 0
    %313 = vmatpush2.bf16.msra.mxu0 0
    %314 = vmatprep.subr.bf16.mxu0 0
    %315 = vmatpush2.bf16.msra.mxu0 0
    %316 = vmatprep.subr.bf16.mxu0 0
    %317 = vmatpush2.bf16.msra.mxu0 0
    %318 = vmatprep.subr.bf16.mxu0 0
    %319 = vmatpush2.bf16.msra.mxu0 0
    %320 = vmatprep.subr.bf16.mxu0 0
    %321 = vmatpush2.bf16.msra.mxu0 0
    %322 = vmatprep.mubr.bf16.mxu0 0
    %323 = vmatmul.mubr.bf16.gmra.mxu0 %v218
    %v324 = vpop.f32.mrf.mxu0
    %v325 = vadd.f32 %v240, %v324
    %v326 = vpop.f32.mrf.mxu0
    %v327 = vpop.f32.mrf.mxu0
    %v328 = vpop.f32.mrf.mxu0
    %329 = vdwg.mxu0
    %v330 = vmax.f32 %v325, 0.0
    %v331 = vpack.c.bf16 %v330, %v330
    %v332 = vld [vmem:[%s5] sm:$0xf]
    %v333 = vld [vmem:[%s5 + $0x4] sm:$0xf]
    %v334 = vld [vmem:[%s5 + $0x8] sm:$0xf]
    %v335 = vld [vmem:[%s5 + $0xc] sm:$0xf]
    %v336 = vld [vmem:[%s5 + $0x10] sm:$0xf]
    %v337 = vld [vmem:[%s5 + $0x14] sm:$0xf]
    %v338 = vld [vmem:[%s5 + $0x18] sm:$0xf]
    %v339 = vld [vmem:[%s5 + $0x1c] sm:$0xf]
    %v340 = vld [vmem:[%s6] sm:$0x1]
    %v342 = vlaneseq
    %v343 = vshrl.u32 %v342, 7
    %v344 = vsub.s32 0, %v343
    %v345 = vrot.slane %v340, %v344
    %v355 = vunpack.c.l.b16 %v332
    %v356 = vunpack.c.l.b16 %v333
    %v357 = vunpack.c.l.b16 %v334
    %v358 = vunpack.c.l.b16 %v335
    %v359 = vunpack.c.l.b16 %v336
    %v360 = vunpack.c.l.b16 %v337
    %v361 = vunpack.c.l.b16 %v338
    %v362 = vunpack.c.l.b16 %v339
    %v363 = vpack.c.b16 %v356, %v355
    %v364 = vpack.c.b16 %v358, %v357
    %v365 = vpack.c.b16 %v360, %v359
    %v366 = vpack.c.b16 %v362, %v361
    %vm371 = vcmask 523264
    %v373 = vsel %vm371, %v331, 0
    %375 = vmatprep.subr.bf16.mxu0 0
    %376 = vmatpush1.bf16.msra.mxu0 0
    %377 = vmatprep.subr.bf16.mxu0 0
    %378 = vmatpush1.bf16.msra.mxu0 0
    %379 = vmatprep.subr.bf16.mxu0 0
    %380 = vmatpush1.bf16.msra.mxu0 0
    %381 = vmatprep.subr.bf16.mxu0 0
    %382 = vmatpush1.bf16.msra.mxu0 0
    %383 = vmatprep.subr.bf16.mxu0 0
    %384 = vmatpush1.bf16.msra.mxu0 %v366
    %385 = vmatprep.subr.bf16.mxu0 0
    %386 = vmatpush1.bf16.msra.mxu0 %v365
    %387 = vmatprep.subr.bf16.mxu0 0
    %388 = vmatpush1.bf16.msra.mxu0 %v364
    %389 = vmatprep.subr.bf16.mxu0 0
    %390 = vmatpush1.bf16.msra.mxu0 %v363
    %391 = vmatprep.subr.bf16.mxu0 0
    %392 = vmatpush2.bf16.msra.mxu0 0
    %393 = vmatprep.subr.bf16.mxu0 0
    %394 = vmatpush2.bf16.msra.mxu0 0
    %395 = vmatprep.subr.bf16.mxu0 0
    %396 = vmatpush2.bf16.msra.mxu0 0
    %397 = vmatprep.subr.bf16.mxu0 0
    %398 = vmatpush2.bf16.msra.mxu0 0
    %399 = vmatprep.subr.bf16.mxu0 0
    %400 = vmatpush2.bf16.msra.mxu0 0
    %401 = vmatprep.subr.bf16.mxu0 0
    %402 = vmatpush2.bf16.msra.mxu0 0
    %403 = vmatprep.subr.bf16.mxu0 0
    %404 = vmatpush2.bf16.msra.mxu0 0
    %405 = vmatprep.subr.bf16.mxu0 0
    %406 = vmatpush2.bf16.msra.mxu0 0
    %407 = vmatprep.mubr.bf16.mxu0 0
    %408 = vmatmul.mubr.bf16.gmra.mxu0 %v373
    %v409 = vpop.f32.mrf.mxu0
    %v410 = vadd.f32 %v345, %v409
    %v411 = vpop.f32.mrf.mxu0
    %v412 = vpop.f32.mrf.mxu0
    %v413 = vpop.f32.mrf.mxu0
    %414 = vdwg.mxu0
    %vm415 = vcmask 254976
    %416 = vst.msk [vmem:[#allocation2] sm:$0x3] %vm415, %v410
    // Predicated region
    $region30: #{channel_encoder_forward.1} parent=1 // pred_check
      _
    $region31: #{channel_encoder_forward.1} parent=1 // pred_check_branch
      %418 = sbr.rel (0) target = $region33
    $region32: #{channel_encoder_forward.1} parent=1 // pred_region
      %s420 = ssub.s32 32, 32
      %421 = vsyncadd [#allocation3], %s420
      %s423 = sshll.u32 [#allocation2], 4
      %s424 = int_to_ptr.vmem [resolvable:$true] %s423
      %426 = dma.vmem_to_hbm [thread:$0]  %s424, 32, %s7, [#allocation3]
    $region33: #{channel_encoder_forward.1} parent=1 // pred_fallthru
      _
    // Predicated region
    $region34: #{channel_encoder_forward.1} parent=1 // pred_check
      _
    $region35: #{channel_encoder_forward.1} parent=1 // pred_check_branch
      %428 = sbr.rel (0) target = $region37
    $region36: #{channel_encoder_forward.1} parent=1 // pred_region
      %429 = dma.done [#allocation3], 32
    $region37: #{channel_encoder_forward.1} parent=1 // pred_fallthru
      _
    %430 = vsyncpa [#allocation3], 1

</llo_original>
